<compile_context>
chip_gen: v6e
topology: v6e:2x2x1
jax: 0.10.0
libtpu: 0.0.40
codegen_flags: <defaults>
</compile_context>

<pallas_src>
import functools

import jax
import jax.numpy as jnp
from jax import lax
from jax.experimental import pallas as pl
from jax.experimental.pallas import tpu as pltpu

LANES = 128
SUBLANES = 8
CHUNK_ROWS = 256            # rows per unrolled inner chunk (bounds vreg live ranges / spill)
_MIN_PALLAS_ELEMS = 32 * 1024  # below this, use the fused-XLA fallback


def _cdiv(a, b):
    return -(-a // b)


def _round_up(a, m):
    return _cdiv(a, m) * m


def _pow_gamma(x, gamma):
    # gamma is a static Python float (2.0 in the relation-head config).
    g = float(gamma)
    if g == 2.0:
        return x * x              # avoid pow -> exp(g*log(x)) (2 extra EUP ops / elem)
    if g == 1.0:
        return x
    if g == 0.0:
        return jnp.ones_like(x)
    return jnp.power(x, g)        # relies on 0**g -> 0 for g > 0


def _as_float(x):
    x = jnp.asarray(x)
    if x.dtype in (jnp.float32, jnp.bfloat16):
        return x                  # keep bf16 in HBM: half the bytes on a mem-bound kernel
    return x.astype(jnp.float32)


def _focal_loss_kernel(p_ref, t_ref, out_ref, *, alpha, gamma, tile_rows, chunk_rows,
                       slab_rows, need_mask, binary_targets):
    # p_ref  : (tile_rows, 128) VMEM -- probabilities (logits=False), f32 or bf16
    # t_ref  : (tile_rows, 128) VMEM -- targets in [0, 1]
    # out_ref: (1, 8, 128) f32 VMEM  -- per-tile partial sums of the focal loss
    i = pl.program_id(0)
    num_chunks = tile_rows // chunk_rows

    def chunk(c, acc):
        r0 = pl.multiple_of(c * chunk_rows, chunk_rows)
        p = p_ref[pl.ds(r0, chunk_rows), :].astype(jnp.float32)
        t = t_ref[pl.ds(r0, chunk_rows), :].astype(jnp.float32)

        if binary_targets:
            # Binary-target fast path: 1 log / element (differs from the general path only
            # by O(exp(-100)) terms when p saturates at 0/1).
            pm = jnp.where(t >= 0.5, p, 1.0 - p)
            bce = -jnp.maximum(jnp.log(pm), -100.0)
            pt = pm
        else:
            # torch BCELoss clamps the log terms at -100 (clamp before the 0-multiply -> no NaN).
            log_p = jnp.maximum(jnp.log(p), -100.0)
            log_1mp = jnp.maximum(jnp.log(1.0 - p), -100.0)
            bce = -(t * log_p + (1.0 - t) * log_1mp)
            pt = jnp.exp(-bce)

        f = alpha * _pow_gamma(1.0 - pt, gamma) * bce     # (chunk_rows, 128)

        if need_mask:
            # Rows past the true slab extent hold stale VMEM garbage (possibly NaN after the
            # math above); a select against the static row count zeroes them exactly.
            row = lax.broadcasted_iota(jnp.int32, (chunk_rows, LANES), 0)
            grow = i * tile_rows + r0 + row
            f = jnp.where(grow < slab_rows, f, 0.0)

        # Fold row-groups of 8 into one (8, 128) vreg-shaped partial (VPU adds only;
        # the reshape stays on (8, 128) tile boundaries).
        return acc + jnp.sum(f.reshape(-1, SUBLANES, LANES), axis=0)

    acc0 = jnp.zeros((SUBLANES, LANES), jnp.float32)
    acc = lax.fori_loop(0, num_chunks, chunk, acc0, unroll=True)
    out_ref[...] = acc[None]


def _focal_loss_ref(inputs, targets, alpha=1.0, gamma=2.0):
    """Pure-JAX reference (also used as the small-n fallback)."""
    p = jnp.asarray(inputs, jnp.float32)
    t = jnp.asarray(targets, jnp.float32)
    log_p = jnp.maximum(jnp.log(p), -100.0)
    log_1mp = jnp.maximum(jnp.log(1.0 - p), -100.0)
    bce = -(t * log_p + (1.0 - t) * log_1mp)
    pt = jnp.exp(-bce)
    f = alpha * (1.0 - pt) ** gamma * bce
    return jnp.mean(f)


def focal_loss(inputs, targets, alpha=1.0, gamma=2.0, *, max_tile_rows=4096,
               binary_targets=False):
    """FocalLoss.forward(inputs, targets) with default config (logits=False, reduce=True,
    ignored_label_idx=None). Returns the scalar mean focal loss."""
    p = _as_float(inputs)
    t = _as_float(targets)
    assert p.shape == t.shape, (p.shape, t.shape)
    n = p.size
    if n == 0:
        return jnp.float32(jnp.nan)                    # torch.mean of an empty tensor
    if n < _MIN_PALLAS_ELEMS:
        # Fixed pallas_call / DMA-pipeline overhead dominates; fused XLA path is faster.
        return _focal_loss_ref(p, t, alpha, gamma)

    p_flat = p.reshape(-1)
    t_flat = t.reshape(-1)
    if n % LANES == 0:
        # Copy-free: reshaping the full contiguous array is a bitcast, no extra HBM traffic.
        slab_rows = n // LANES
        p_slab = p_flat.reshape(slab_rows, LANES)
        t_slab = t_flat.reshape(slab_rows, LANES)
    else:
        # Pad by at most 127 elements to reach a lane multiple.  (p=1, t=1) contributes
        # exactly 0 focal loss, so sums are unaffected even without masking.
        slab_rows = _cdiv(n, LANES)
        pad = slab_rows * LANES - n
        p_slab = jnp.pad(p_flat, (0, pad), constant_values=1.0).reshape(slab_rows, LANES)
        t_slab = jnp.pad(t_flat, (0, pad), constant_values=1.0).reshape(slab_rows, LANES)

    # Tile selection: multiple of CHUNK_ROWS, <= max_tile_rows (4096 rows = 2 MiB/input/buffer
    # for f32 -> 8 MiB double-buffered, inside every generation's scoped-VMEM default; raise
    # vmem_limit_bytes before going past 4096 on v5e).  Aim for several tiles so the
    # double-buffered pipeline and both v7x TensorCores have work.
    assert max_tile_rows % CHUNK_ROWS == 0, max_tile_rows
    tile_rows = min(int(max_tile_rows), _round_up(_cdiv(slab_rows, 8), CHUNK_ROWS))
    num_tiles = _cdiv(slab_rows, tile_rows)
    if num_tiles > 1 and num_tiles % 2:                # best-effort even tile count (v7x 2 TCs)
        alt = _round_up(_cdiv(slab_rows, num_tiles + 1), CHUNK_ROWS)
        if _cdiv(slab_rows, alt) % 2 == 0:
            tile_rows, num_tiles = alt, _cdiv(slab_rows, alt)
    need_mask = num_tiles * tile_rows != slab_rows     # last grid tile overruns the slab

    kernel = functools.partial(
        _focal_loss_kernel, alpha=float(alpha), gamma=float(gamma),
        tile_rows=tile_rows, chunk_rows=CHUNK_ROWS, slab_rows=slab_rows,
        need_mask=need_mask, binary_targets=bool(binary_targets))

    cost = pl.CostEstimate(
        flops=12 * n,
        transcendentals=(1 if binary_targets else 3) * n,
        bytes_accessed=n * (p_slab.dtype.itemsize + t_slab.dtype.itemsize)
        + num_tiles * SUBLANES * LANES * 4)

    partials = pl.pallas_call(
        kernel,
        out_shape=jax.ShapeDtypeStruct((num_tiles, SUBLANES, LANES), jnp.float32),
        grid=(num_tiles,),
        in_specs=[
            pl.BlockSpec((tile_rows, LANES), lambda i: (i, 0)),
            pl.BlockSpec((tile_rows, LANES), lambda i: (i, 0)),
        ],
        out_specs=pl.BlockSpec((1, SUBLANES, LANES), lambda i: (i, 0, 0)),
        compiler_params=pltpu.CompilerParams(dimension_semantics=("parallel",)),
        cost_estimate=cost,
    )(p_slab, t_slab)

    # Tiny final reduction (num_tiles * 1024 f32) + mean over the true element count.
    return jnp.sum(partials) / jnp.float32(n)


if __name__ == "__main__":
    key = jax.random.PRNGKey(0)
    k1, k2, k3, k4, k5, k6 = jax.random.split(key, 6)

    # (1) Typical relation-proposal-head call: small 1-D vector of link probabilities and
    #     binary float targets -> pure-JAX small-n path.
    n_small = 300
    p_s = jax.nn.sigmoid(jax.random.normal(k1, (n_small,), jnp.float32))
    t_s = (jax.random.randint(k2, (n_small,), 0, 5) > 0).astype(jnp.float32)
    out_s = jax.block_until_ready(focal_loss(p_s, t_s))
    ref_s = _focal_loss_ref(p_s, t_s)
    assert jnp.allclose(out_s, ref_s, rtol=5e-5, atol=1e-6), (out_s, ref_s)

    # (2) Pallas kernel, lane-aligned n (n % 128 == 0) -> zero-copy reshape path, no masking.
    n_al = 64 * 1024
    p_a = jax.nn.sigmoid(jax.random.normal(k3, (n_al,), jnp.float32))
    t_a = (jax.random.randint(k4, (n_al,), 0, 5) > 0).astype(jnp.float32)
    out_a = jax.block_until_ready(focal_loss(p_a, t_a))
    ref_a = _focal_loss_ref(p_a, t_a)
    assert jnp.allclose(out_a, ref_a, rtol=5e-5, atol=1e-6), (out_a, ref_a)

    # (3) Pallas kernel, unaligned n, general float targets -> <=127-element pad plus
    #     in-kernel row masking of the overrunning last grid tile.
    n_un = 50_000
    p_u = jax.nn.sigmoid(jax.random.normal(k5, (n_un,), jnp.float32))
    t_u = jax.random.uniform(k6, (n_un,), jnp.float32)
    out_u = jax.block_until_ready(focal_loss(p_u, t_u))
    ref_u = _focal_loss_ref(p_u, t_u)
    assert jnp.allclose(out_u, ref_u, rtol=5e-5, atol=1e-6), (out_u, ref_u)

    print("KERNEL_OK")
</pallas_src>

<mosaic_0001>
module attributes {stable_mosaic.version = 11 : i64} {
  func.func @_focal_loss_kernel(%arg0: i32, %arg1: memref<256x128xf32, #tpu.memory_space<vmem>>, %arg2: memref<256x128xf32, #tpu.memory_space<vmem>>, %arg3: memref<1x8x128xf32, #tpu.memory_space<vmem>>) attributes {dimension_semantics = [#tpu.dimension_semantics<parallel>], iteration_bounds = array<i64: 2>, scalar_prefetch = 0 : i64, scratch_operands = 0 : i64, tpu.core_type = #tpu.core_type<tc>, window_params = [{transform_indices = @transform_0, window_bounds = array<i64: 256, 128>}, {transform_indices = @transform_1, window_bounds = array<i64: 256, 128>}, {transform_indices = @transform_2, window_bounds = array<i64: 1, 8, 128>}]} {
    %cst = arith.constant 0.000000e+00 : f32
    %0 = vector.broadcast %cst : f32 to vector<8x128xf32>
    %c0_i32 = arith.constant 0 : i32
    %c256_i32 = arith.constant 256 : i32
    %1 = arith.muli %c0_i32, %c256_i32 : i32
    %2 = tpu.assume_multiple %1, 256 : i32
    %3 = arith.index_cast %2 : i32 to index
    %c0 = arith.constant 0 : index
    %4 = vector.load %arg1[%3, %c0] : memref<256x128xf32, #tpu.memory_space<vmem>>, vector<256x128xf32>
    %5 = arith.index_cast %2 : i32 to index
    %c0_0 = arith.constant 0 : index
    %6 = vector.load %arg2[%5, %c0_0] : memref<256x128xf32, #tpu.memory_space<vmem>>, vector<256x128xf32>
    %7 = math.log %4 : vector<256x128xf32>
    %cst_1 = arith.constant -1.000000e+02 : f32
    %8 = vector.broadcast %cst_1 : f32 to vector<256x128xf32>
    %9 = arith.maximumf %7, %8 : vector<256x128xf32>
    %cst_2 = arith.constant 1.000000e+00 : f32
    %10 = vector.broadcast %cst_2 : f32 to vector<256x128xf32>
    %11 = arith.subf %10, %4 : vector<256x128xf32>
    %12 = math.log %11 : vector<256x128xf32>
    %cst_3 = arith.constant -1.000000e+02 : f32
    %13 = vector.broadcast %cst_3 : f32 to vector<256x128xf32>
    %14 = arith.maximumf %12, %13 : vector<256x128xf32>
    %15 = arith.mulf %6, %9 : vector<256x128xf32>
    %cst_4 = arith.constant 1.000000e+00 : f32
    %16 = vector.broadcast %cst_4 : f32 to vector<256x128xf32>
    %17 = arith.subf %16, %6 : vector<256x128xf32>
    %18 = arith.mulf %17, %14 : vector<256x128xf32>
    %19 = arith.addf %15, %18 : vector<256x128xf32>
    %cst_5 = arith.constant 0.000000e+00 : f32
    %20 = vector.broadcast %cst_5 : f32 to vector<256x128xf32>
    %21 = arith.subf %20, %19 : vector<256x128xf32>
    %cst_6 = arith.constant 0.000000e+00 : f32
    %22 = vector.broadcast %cst_6 : f32 to vector<256x128xf32>
    %23 = arith.subf %22, %21 : vector<256x128xf32>
    %24 = math.exp %23 : vector<256x128xf32>
    %cst_7 = arith.constant 1.000000e+00 : f32
    %25 = vector.broadcast %cst_7 : f32 to vector<256x128xf32>
    %26 = arith.subf %25, %24 : vector<256x128xf32>
    %27 = arith.mulf %26, %26 : vector<256x128xf32>
    %cst_8 = arith.constant 1.000000e+00 : f32
    %28 = vector.broadcast %cst_8 : f32 to vector<256x128xf32>
    %29 = arith.mulf %28, %27 : vector<256x128xf32>
    %30 = arith.mulf %29, %21 : vector<256x128xf32>
    %31 = vector.shape_cast %30 : vector<256x128xf32> to vector<32x8x128xf32>
    %cst_9 = arith.constant dense<0.000000e+00> : vector<8x128xf32>
    %32 = vector.multi_reduction <add>, %31, %cst_9 [0] : vector<32x8x128xf32> to vector<8x128xf32>
    %33 = arith.addf %0, %32 : vector<8x128xf32>
    %c1_i32 = arith.constant 1 : i32
    %34 = vector.shape_cast %33 : vector<8x128xf32> to vector<1x8x128xf32>
    %c0_10 = arith.constant 0 : index
    %c0_11 = arith.constant 0 : index
    %c0_12 = arith.constant 0 : index
    %35 = vector.load %arg3[%c0_10, %c0_11, %c0_12] : memref<1x8x128xf32, #tpu.memory_space<vmem>>, vector<1x8x128xf32>
    tpu.vector_store %arg3[%c0_10, %c0_11, %c0_12], %34 {strides = array<i32>} : memref<1x8x128xf32, #tpu.memory_space<vmem>>, vector<1x8x128xf32>,
    return
  }
  func.func @transform_0(%arg0: i32) -> (i32, i32) {
    %c0_i32 = arith.constant 0 : i32
    %c0_i32_0 = arith.constant 0 : i32
    return %arg0, %c0_i32 : i32, i32
  }
  func.func @transform_1(%arg0: i32) -> (i32, i32) {
    %c0_i32 = arith.constant 0 : i32
    %c0_i32_0 = arith.constant 0 : i32
    return %arg0, %c0_i32 : i32, i32
  }
  func.func @transform_2(%arg0: i32) -> (i32, i32, i32) {
    %c0_i32 = arith.constant 0 : i32
    %c0_i32_0 = arith.constant 0 : i32
    %c0_i32_1 = arith.constant 0 : i32
    return %arg0, %c0_i32, %c0_i32_0 : i32, i32, i32
  }
}

</mosaic_0001>

<llo_original>
// kernel: tpu_custom_call.1
$region0: #{tpu_custom_call.1}
  #allocation0 [shape = 'u32[]', space=smem, size = 0x4, offset = 0x4, fixed_abs, tag = 'smem constant byte address 0x4 - core index']
  #allocation1 [shape = 'u32[144,128]{1,0:T(1,128)}', space=vmem, size = 0x12000, scoped, tag = 'internal scratch']
  %s0 = inlined_call_operand.hbm [shape: f32[512,128], index: 0, kind: input, shape index: {}]
  %s1 = inlined_call_operand.hbm [shape: f32[512,128], index: 1, kind: input, shape index: {}]
  %s2 = inlined_call_operand.hbm [shape: f32[2,8,128], index: 2, kind: output, shape index: {}]
  %s3 = sld [smem:[#allocation0]]
  $region49: #{tpu_custom_call.1} parent=0
    _
  %s5 = ssub.s32 1, %s3
  %s6 = scalar_select 0, %s5, %s3
  $region1: #{tpu_custom_call.1} parent=0
    #allocation2 [shape = 'u8[262144]{0}', space=vmem, size = 0x40000, scoped, tag = 'input window, operand 0']
    #allocation3 [shape = 's32[2]{0}', space=sflag, size = 0x8, scoped, tag = 'scoped memory for tpu_custom_call.1']
    #allocation4 [shape = 's32[2]{0}', space=sflag, size = 0x8, scoped, tag = 'scoped memory for tpu_custom_call.1']
    #allocation5 [shape = 'u8[262144]{0}', space=vmem, size = 0x40000, scoped, tag = 'input window, operand 1']
    #allocation6 [shape = 's32[2]{0}', space=sflag, size = 0x8, scoped, tag = 'scoped memory for tpu_custom_call.1']
    #allocation7 [shape = 'u8[8192]{0}', space=vmem, size = 0x2000, scoped, tag = 'output window, operand 0']
    %7 = vsyncpa [#allocation3], 0
    %s8 = scalar_lea.sflag [#allocation3], 1
    %9 = vsyncpa %s8, 0
    %10 = vsyncpa [#allocation6], 0
    %s11 = scalar_lea.sflag [#allocation6], 1
    %12 = vsyncpa %s11, 0
    %13 = vsyncpa [#allocation4], 0
    %s14 = scalar_lea.sflag [#allocation4], 1
    %15 = vsyncpa %s14, 0
    loop: start=0, step=1, limit=4
    $region2: #{tpu_custom_call.1} parent=1 // loop_pre_header
      _
    $region3: #{tpu_custom_call.1} parent=1 // loop_header
      %s17 = sphi 0, %s21
      %p18 = scmp.ge.s32.totalorder %s17, 4
      %s27 = sphi 0, %s29
      %s30 = sphi 0, %s27
      %s31 = sphi 0, %s30
      %s47 = sphi 0, %s31
      %s53 = sphi 0, %s55
      %s56 = sphi 0, %s53
      %s57 = sphi 0, %s56
      %s73 = sphi 0, %s57
      %s79 = sphi 0, %s81
      %s82 = sphi 0, %s79
      %s83 = sphi 0, %s82
      %s99 = sphi 0, %s83
    $region4: #{tpu_custom_call.1} parent=1 // loop_header_branch
      %20 = sbr.rel (%p18) target = $region8
    $region5: #{tpu_custom_call.1} parent=1 // loop_body
      %s22 = ssub.s32 %s17, 1
      %s23 = ssub.s32 %s17, 2
      %s24 = sadd.s32 %s17, 1
      %s25 = ssub.s32 %s17, %s24
      %p26 = scmp.eq.s32.totalorder %s25, 0
      %s28 = sadd.s32 %s27, 1
      %s29 = scalar_select %p26, %s27, %s28
      %p32 = pneg %p26
      %p33 = scmp.eq.s32.totalorder %s17, 1
      %p34 = por %p32, %p33
      %p35 = scmp.ne.s32.totalorder %s27, %s30
      %p36 = scmp.eq.s32.totalorder %s17, 0
      %p37 = por %p35, %p36
      %p38 = scmp.ne.s32.totalorder %s27, %s30
      %p39 = scmp.eq.s32.totalorder %s22, 1
      %p40 = por %p38, %p39
      %p41 = scmp.ne.s32.totalorder %s30, %s31
      %p42 = scmp.eq.s32.totalorder %s22, 0
      %p43 = por %p41, %p42
      %p44 = scmp.ne.s32.totalorder %s30, %s31
      %p45 = scmp.eq.s32.totalorder %s23, 1
      %p46 = por %p44, %p45
      %p48 = scmp.ne.s32.totalorder %s31, %s47
      %p49 = scmp.eq.s32.totalorder %s23, 0
      %p50 = por %p48, %p49
      %s51 = ssub.s32 %s17, %s24
      %p52 = scmp.eq.s32.totalorder %s51, 0
      %s54 = sadd.s32 %s53, 1
      %s55 = scalar_select %p52, %s53, %s54
      %p58 = pneg %p52
      %p59 = scmp.eq.s32.totalorder %s17, 1
      %p60 = por %p58, %p59
      %p61 = scmp.ne.s32.totalorder %s53, %s56
      %p62 = scmp.eq.s32.totalorder %s17, 0
      %p63 = por %p61, %p62
      %p64 = scmp.ne.s32.totalorder %s53, %s56
      %p65 = scmp.eq.s32.totalorder %s22, 1
      %p66 = por %p64, %p65
      %p67 = scmp.ne.s32.totalorder %s56, %s57
      %p68 = scmp.eq.s32.totalorder %s22, 0
      %p69 = por %p67, %p68
      %p70 = scmp.ne.s32.totalorder %s56, %s57
      %p71 = scmp.eq.s32.totalorder %s23, 1
      %p72 = por %p70, %p71
      %p74 = scmp.ne.s32.totalorder %s57, %s73
      %p75 = scmp.eq.s32.totalorder %s23, 0
      %p76 = por %p74, %p75
      %s77 = ssub.s32 %s17, %s24
      %p78 = scmp.eq.s32.totalorder %s77, 0
      %s80 = sadd.s32 %s79, 1
      %s81 = scalar_select %p78, %s79, %s80
      %p84 = pneg %p78
      %p85 = scmp.eq.s32.totalorder %s17, 1
      %p86 = por %p84, %p85
      %p87 = scmp.ne.s32.totalorder %s79, %s82
      %p88 = scmp.eq.s32.totalorder %s17, 0
      %p89 = por %p87, %p88
      %p90 = scmp.ne.s32.totalorder %s79, %s82
      %p91 = scmp.eq.s32.totalorder %s22, 1
      %p92 = por %p90, %p91
      %p93 = scmp.ne.s32.totalorder %s82, %s83
      %p94 = scmp.eq.s32.totalorder %s22, 0
      %p95 = por %p93, %p94
      %p96 = scmp.ne.s32.totalorder %s82, %s83
      %p97 = scmp.eq.s32.totalorder %s23, 1
      %p98 = por %p96, %p97
      %p100 = scmp.ne.s32.totalorder %s83, %s99
      %p101 = scmp.eq.s32.totalorder %s23, 0
      %p102 = por %p100, %p101
      %p103 = scmp.le.s32.totalorder 1, %s17
      %p104 = scmp.lt.s32.totalorder %s17, 3
      %p105 = pnand %p103, %p104
      %p106 = pneg %p105
      // Predicated region
      $region9: #{tpu_custom_call.1} parent=5 // pred_check
        _
      $region10: #{tpu_custom_call.1} parent=5 // pred_check_branch
        %108 = sbr.rel (%p105) target = $region12
      $region11: #{tpu_custom_call.1} parent=5 // pred_region
        %s109 = ssub.s32 %s17, 1
      $region12: #{tpu_custom_call.1} parent=5 // pred_fallthru
        _
      %p110 = scmp.lt.s32.totalorder %s17, 2
      // Predicated region
      $region13: #{tpu_custom_call.1} parent=5 // pred_check
        %p111 = pneg %p110
      $region14: #{tpu_custom_call.1} parent=5 // pred_check_branch
        %113 = sbr.rel (%p111) target = $region16
      $region15: #{tpu_custom_call.1} parent=5 // pred_region
        // Predicated region
        $region17: #{tpu_custom_call.1} parent=15 // pred_check
          %p114 = pneg %p37
        $region18: #{tpu_custom_call.1} parent=15 // pred_check_branch
          %116 = sbr.rel (%p114) target = $region20
        $region19: #{tpu_custom_call.1} parent=15 // pred_region
          %s117 = sand.u32 %s27, 1
          %s118 = scalar_lea.sflag [#allocation3], %s117
          %s119 = sand.u32 %s27, 1
          %s120 = smul.addr %s119, 256
          %s121 = scalar_lea.vmem [#allocation2], %s120
          %s122 = smul.u32 32, %s17
          %s124 = ssub.s32 4096, 4096
          %125 = vsyncadd %s118, %s124
          %s126 = smul.addr %s122, 128
          %s127 = scalar_lea.hbm %s0, %s126
          %s128 = sshll.u32 %s121, 4
          %s129 = int_to_ptr.vmem [resolvable:$true] %s128
          %134 = dma.hbm_to_vmem [thread:$0]  %s127, 4096, %s129, %s118, 128, 128, 8
        $region20: #{tpu_custom_call.1} parent=15 // pred_fallthru
          _
        // Predicated region
        $region21: #{tpu_custom_call.1} parent=15 // pred_check
          %p135 = pneg %p63
        $region22: #{tpu_custom_call.1} parent=15 // pred_check_branch
          %137 = sbr.rel (%p135) target = $region24
        $region23: #{tpu_custom_call.1} parent=15 // pred_region
          %s138 = sand.u32 %s53, 1
          %s139 = scalar_lea.sflag [#allocation6], %s138
          %s140 = sand.u32 %s53, 1
          %s141 = smul.addr %s140, 256
          %s142 = scalar_lea.vmem [#allocation5], %s141
          %s143 = smul.u32 32, %s17
          %s145 = ssub.s32 4096, 4096
          %146 = vsyncadd %s139, %s145
          %s147 = smul.addr %s143, 128
          %s148 = scalar_lea.hbm %s1, %s147
          %s149 = sshll.u32 %s142, 4
          %s150 = int_to_ptr.vmem [resolvable:$true] %s149
          %155 = dma.hbm_to_vmem [thread:$0]  %s148, 4096, %s150, %s139, 128, 128, 8
        $region24: #{tpu_custom_call.1} parent=15 // pred_fallthru
          _
      $region16: #{tpu_custom_call.1} parent=5 // pred_fallthru
        _
      %p156 = scmp.le.s32.totalorder 1, %s17
      %p157 = scmp.lt.s32.totalorder %s17, 3
      %p158 = pnand %p156, %p157
      %p159 = pneg %p158
      // Predicated region
      $region25: #{tpu_custom_call.1} parent=5 // pred_check
        _
      $region26: #{tpu_custom_call.1} parent=5 // pred_check_branch
        %161 = sbr.rel (%p158) target = $region28
      $region27: #{tpu_custom_call.1} parent=5 // pred_region
        %s162 = ssub.s32 %s17, 1
        %s163 = sand.u32 %s30, 1
        %s164 = scalar_lea.sflag [#allocation3], %s163
        %s165 = sand.u32 %s30, 1
        %s166 = smul.addr %s165, 256
        %s167 = scalar_lea.vmem [#allocation2], %s166
        // Predicated region
        $region29: #{tpu_custom_call.1} parent=27 // pred_check
          %p168 = pneg %p43
        $region30: #{tpu_custom_call.1} parent=27 // pred_check_branch
          %170 = sbr.rel (%p168) target = $region32
        $region31: #{tpu_custom_call.1} parent=27 // pred_region
          %171 = dma.done %s164, 4096
        $region32: #{tpu_custom_call.1} parent=27 // pred_fallthru
          _
        %s172 = sand.u32 %s56, 1
        %s173 = scalar_lea.sflag [#allocation6], %s172
        %s174 = sand.u32 %s56, 1
        %s175 = smul.addr %s174, 256
        %s176 = scalar_lea.vmem [#allocation5], %s175
        // Predicated region
        $region33: #{tpu_custom_call.1} parent=27 // pred_check
          %p177 = pneg %p69
        $region34: #{tpu_custom_call.1} parent=27 // pred_check_branch
          %179 = sbr.rel (%p177) target = $region36
        $region35: #{tpu_custom_call.1} parent=27 // pred_region
          %180 = dma.done %s173, 4096
        $region36: #{tpu_custom_call.1} parent=27 // pred_fallthru
          _
        %s181 = sand.u32 %s30, 1
        %s182 = scalar_lea.sflag [#allocation3], %s181
        %s183 = sand.u32 %s30, 1
        %s184 = smul.addr %s183, 256
        %s185 = scalar_lea.vmem [#allocation2], %s184
        %p186 = pneg %p43
        %p187 = pneg %p40
        %s188 = sand.u32 %s56, 1
        %s189 = scalar_lea.sflag [#allocation6], %s188
        %s190 = sand.u32 %s56, 1
        %s191 = smul.addr %s190, 256
        %s192 = scalar_lea.vmem [#allocation5], %s191
        %p193 = pneg %p69
        %p194 = pneg %p66
        %p195 = pneg %p95
        %p196 = pneg %p92
        %s197 = sand.u32 %s82, 1
        %s198 = scalar_lea.sflag [#allocation4], %s197
        %s199 = sand.u32 %s82, 1
        %s200 = smul.addr %s199, 8
        %s201 = scalar_lea.vmem [#allocation7], %s200
        %s202 = smul.u32 32, %s22
        %s203 = smul.u32 32, %s22
        %v204 = vld [vmem:[%s167] sm:$0xff]
        %v205 = vld [vmem:[%s167 + $0x8] sm:$0xff]
        %v206 = vld [vmem:[%s167 + $0x10] sm:$0xff]
        %v207 = vld [vmem:[%s167 + $0x18] sm:$0xff]
        %v208 = vld [vmem:[%s167 + $0x20] sm:$0xff]
        %v209 = vld [vmem:[%s167 + $0x28] sm:$0xff]
        %v210 = vld [vmem:[%s167 + $0x30] sm:$0xff]
        %v211 = vld [vmem:[%s167 + $0x38] sm:$0xff]
        %v212 = vld [vmem:[%s167 + $0x40] sm:$0xff]
        %v213 = vld [vmem:[%s167 + $0x48] sm:$0xff]
        %v214 = vld [vmem:[%s167 + $0x50] sm:$0xff]
        %v215 = vld [vmem:[%s167 + $0x58] sm:$0xff]
        %v216 = vld [vmem:[%s167 + $0x60] sm:$0xff]
        %v217 = vld [vmem:[%s167 + $0x68] sm:$0xff]
        %v218 = vld [vmem:[%s167 + $0x70] sm:$0xff]
        %v219 = vld [vmem:[%s167 + $0x78] sm:$0xff]
        %v220 = vld [vmem:[%s167 + $0x80] sm:$0xff]
        %v221 = vld [vmem:[%s167 + $0x88] sm:$0xff]
        %v222 = vld [vmem:[%s167 + $0x90] sm:$0xff]
        %v223 = vld [vmem:[%s167 + $0x98] sm:$0xff]
        %v224 = vld [vmem:[%s167 + $0xa0] sm:$0xff]
        %v225 = vld [vmem:[%s167 + $0xa8] sm:$0xff]
        %v226 = vld [vmem:[%s167 + $0xb0] sm:$0xff]
        %v227 = vld [vmem:[%s167 + $0xb8] sm:$0xff]
        %v228 = vld [vmem:[%s167 + $0xc0] sm:$0xff]
        %v229 = vld [vmem:[%s167 + $0xc8] sm:$0xff]
        %v230 = vld [vmem:[%s167 + $0xd0] sm:$0xff]
        %v231 = vld [vmem:[%s167 + $0xd8] sm:$0xff]
        %v232 = vld [vmem:[%s167 + $0xe0] sm:$0xff]
        %v233 = vld [vmem:[%s167 + $0xe8] sm:$0xff]
        %v234 = vld [vmem:[%s167 + $0xf0] sm:$0xff]
        %v235 = vld [vmem:[%s167 + $0xf8] sm:$0xff]
        %v236 = vld [vmem:[%s176] sm:$0xff]
        %v237 = vld [vmem:[%s176 + $0x8] sm:$0xff]
        %v238 = vld [vmem:[%s176 + $0x10] sm:$0xff]
        %v239 = vld [vmem:[%s176 + $0x18] sm:$0xff]
        %v240 = vld [vmem:[%s176 + $0x20] sm:$0xff]
        %v241 = vld [vmem:[%s176 + $0x28] sm:$0xff]
        %v242 = vld [vmem:[%s176 + $0x30] sm:$0xff]
        %v243 = vld [vmem:[%s176 + $0x38] sm:$0xff]
        %v244 = vld [vmem:[%s176 + $0x40] sm:$0xff]
        %v245 = vld [vmem:[%s176 + $0x48] sm:$0xff]
        %v246 = vld [vmem:[%s176 + $0x50] sm:$0xff]
        %v247 = vld [vmem:[%s176 + $0x58] sm:$0xff]
        %v248 = vld [vmem:[%s176 + $0x60] sm:$0xff]
        %v249 = vld [vmem:[%s176 + $0x68] sm:$0xff]
        %v250 = vld [vmem:[%s176 + $0x70] sm:$0xff]
        %v251 = vld [vmem:[%s176 + $0x78] sm:$0xff]
        %v252 = vld [vmem:[%s176 + $0x80] sm:$0xff]
        %v253 = vld [vmem:[%s176 + $0x88] sm:$0xff]
        %v254 = vld [vmem:[%s176 + $0x90] sm:$0xff]
        %v255 = vld [vmem:[%s176 + $0x98] sm:$0xff]
        %v256 = vld [vmem:[%s176 + $0xa0] sm:$0xff]
        %v257 = vld [vmem:[%s176 + $0xa8] sm:$0xff]
        %v258 = vld [vmem:[%s176 + $0xb0] sm:$0xff]
        %v259 = vld [vmem:[%s176 + $0xb8] sm:$0xff]
        %v260 = vld [vmem:[%s176 + $0xc0] sm:$0xff]
        %v261 = vld [vmem:[%s176 + $0xc8] sm:$0xff]
        %v262 = vld [vmem:[%s176 + $0xd0] sm:$0xff]
        %v263 = vld [vmem:[%s176 + $0xd8] sm:$0xff]
        %v264 = vld [vmem:[%s176 + $0xe0] sm:$0xff]
        %v265 = vld [vmem:[%s176 + $0xe8] sm:$0xff]
        %v266 = vld [vmem:[%s176 + $0xf0] sm:$0xff]
        %v267 = vld [vmem:[%s176 + $0xf8] sm:$0xff]
        %v268 = vlog2.pop %v204
        %v269 = vmul.f32 %v268, 0.6931472
        %v270 = vlog2.pop %v205
        %v271 = vmul.f32 %v270, 0.6931472
        %v272 = vlog2.pop %v206
        %v273 = vmul.f32 %v272, 0.6931472
        %v274 = vlog2.pop %v207
        %v275 = vmul.f32 %v274, 0.6931472
        %v276 = vlog2.pop %v208
        %v277 = vmul.f32 %v276, 0.6931472
        %v278 = vlog2.pop %v209
        %v279 = vmul.f32 %v278, 0.6931472
        %v280 = vlog2.pop %v210
        %v281 = vmul.f32 %v280, 0.6931472
        %v282 = vlog2.pop %v211
        %v283 = vmul.f32 %v282, 0.6931472
        %v284 = vlog2.pop %v212
        %v285 = vmul.f32 %v284, 0.6931472
        %v286 = vlog2.pop %v213
        %v287 = vmul.f32 %v286, 0.6931472
        %v288 = vlog2.pop %v214
        %v289 = vmul.f32 %v288, 0.6931472
        %v290 = vlog2.pop %v215
        %v291 = vmul.f32 %v290, 0.6931472
        %v292 = vlog2.pop %v216
        %v293 = vmul.f32 %v292, 0.6931472
        %v294 = vlog2.pop %v217
        %v295 = vmul.f32 %v294, 0.6931472
        %v296 = vlog2.pop %v218
        %v297 = vmul.f32 %v296, 0.6931472
        %v298 = vlog2.pop %v219
        %v299 = vmul.f32 %v298, 0.6931472
        %v300 = vlog2.pop %v220
        %v301 = vmul.f32 %v300, 0.6931472
        %v302 = vlog2.pop %v221
        %v303 = vmul.f32 %v302, 0.6931472
        %v304 = vlog2.pop %v222
        %v305 = vmul.f32 %v304, 0.6931472
        %v306 = vlog2.pop %v223
        %v307 = vmul.f32 %v306, 0.6931472
        %v308 = vlog2.pop %v224
        %v309 = vmul.f32 %v308, 0.6931472
        %v310 = vlog2.pop %v225
        %v311 = vmul.f32 %v310, 0.6931472
        %v312 = vlog2.pop %v226
        %v313 = vmul.f32 %v312, 0.6931472
        %v314 = vlog2.pop %v227
        %v315 = vmul.f32 %v314, 0.6931472
        %v316 = vlog2.pop %v228
        %v317 = vmul.f32 %v316, 0.6931472
        %v318 = vlog2.pop %v229
        %v319 = vmul.f32 %v318, 0.6931472
        %v320 = vlog2.pop %v230
        %v321 = vmul.f32 %v320, 0.6931472
        %v322 = vlog2.pop %v231
        %v323 = vmul.f32 %v322, 0.6931472
        %v324 = vlog2.pop %v232
        %v325 = vmul.f32 %v324, 0.6931472
        %v326 = vlog2.pop %v233
        %v327 = vmul.f32 %v326, 0.6931472
        %v328 = vlog2.pop %v234
        %v329 = vmul.f32 %v328, 0.6931472
        %v330 = vlog2.pop %v235
        %v331 = vmul.f32 %v330, 0.6931472
        %v332 = vmax.f32 %v269, -100.0
        %v333 = vmax.f32 %v271, -100.0
        %v334 = vmax.f32 %v273, -100.0
        %v335 = vmax.f32 %v275, -100.0
        %v336 = vmax.f32 %v277, -100.0
        %v337 = vmax.f32 %v279, -100.0
        %v338 = vmax.f32 %v281, -100.0
        %v339 = vmax.f32 %v283, -100.0
        %v340 = vmax.f32 %v285, -100.0
        %v341 = vmax.f32 %v287, -100.0
        %v342 = vmax.f32 %v289, -100.0
        %v343 = vmax.f32 %v291, -100.0
        %v344 = vmax.f32 %v293, -100.0
        %v345 = vmax.f32 %v295, -100.0
        %v346 = vmax.f32 %v297, -100.0
        %v347 = vmax.f32 %v299, -100.0
        %v348 = vmax.f32 %v301, -100.0
        %v349 = vmax.f32 %v303, -100.0
        %v350 = vmax.f32 %v305, -100.0
        %v351 = vmax.f32 %v307, -100.0
        %v352 = vmax.f32 %v309, -100.0
        %v353 = vmax.f32 %v311, -100.0
        %v354 = vmax.f32 %v313, -100.0
        %v355 = vmax.f32 %v315, -100.0
        %v356 = vmax.f32 %v317, -100.0
        %v357 = vmax.f32 %v319, -100.0
        %v358 = vmax.f32 %v321, -100.0
        %v359 = vmax.f32 %v323, -100.0
        %v360 = vmax.f32 %v325, -100.0
        %v361 = vmax.f32 %v327, -100.0
        %v362 = vmax.f32 %v329, -100.0
        %v363 = vmax.f32 %v331, -100.0
        %v364 = vsub.f32 1.0, %v204
        %v365 = vsub.f32 1.0, %v205
        %v366 = vsub.f32 1.0, %v206
        %v367 = vsub.f32 1.0, %v207
        %v368 = vsub.f32 1.0, %v208
        %v369 = vsub.f32 1.0, %v209
        %v370 = vsub.f32 1.0, %v210
        %v371 = vsub.f32 1.0, %v211
        %v372 = vsub.f32 1.0, %v212
        %v373 = vsub.f32 1.0, %v213
        %v374 = vsub.f32 1.0, %v214
        %v375 = vsub.f32 1.0, %v215
        %v376 = vsub.f32 1.0, %v216
        %v377 = vsub.f32 1.0, %v217
        %v378 = vsub.f32 1.0, %v218
        %v379 = vsub.f32 1.0, %v219
        %v380 = vsub.f32 1.0, %v220
        %v381 = vsub.f32 1.0, %v221
        %v382 = vsub.f32 1.0, %v222
        %v383 = vsub.f32 1.0, %v223
        %v384 = vsub.f32 1.0, %v224
        %v385 = vsub.f32 1.0, %v225
        %v386 = vsub.f32 1.0, %v226
        %v387 = vsub.f32 1.0, %v227
        %v388 = vsub.f32 1.0, %v228
        %v389 = vsub.f32 1.0, %v229
        %v390 = vsub.f32 1.0, %v230
        %v391 = vsub.f32 1.0, %v231
        %v392 = vsub.f32 1.0, %v232
        %v393 = vsub.f32 1.0, %v233
        %v394 = vsub.f32 1.0, %v234
        %v395 = vsub.f32 1.0, %v235
        %v396 = vlog2.pop %v364
        %v397 = vmul.f32 %v396, 0.6931472
        %v398 = vlog2.pop %v365
        %v399 = vmul.f32 %v398, 0.6931472
        %v400 = vlog2.pop %v366
        %v401 = vmul.f32 %v400, 0.6931472
        %v402 = vlog2.pop %v367
        %v403 = vmul.f32 %v402, 0.6931472
        %v404 = vlog2.pop %v368
        %v405 = vmul.f32 %v404, 0.6931472
        %v406 = vlog2.pop %v369
        %v407 = vmul.f32 %v406, 0.6931472
        %v408 = vlog2.pop %v370
        %v409 = vmul.f32 %v408, 0.6931472
        %v410 = vlog2.pop %v371
        %v411 = vmul.f32 %v410, 0.6931472
        %v412 = vlog2.pop %v372
        %v413 = vmul.f32 %v412, 0.6931472
        %v414 = vlog2.pop %v373
        %v415 = vmul.f32 %v414, 0.6931472
        %v416 = vlog2.pop %v374
        %v417 = vmul.f32 %v416, 0.6931472
        %v418 = vlog2.pop %v375
        %v419 = vmul.f32 %v418, 0.6931472
        %v420 = vlog2.pop %v376
        %v421 = vmul.f32 %v420, 0.6931472
        %v422 = vlog2.pop %v377
        %v423 = vmul.f32 %v422, 0.6931472
        %v424 = vlog2.pop %v378
        %v425 = vmul.f32 %v424, 0.6931472
        %v426 = vlog2.pop %v379
        %v427 = vmul.f32 %v426, 0.6931472
        %v428 = vlog2.pop %v380
        %v429 = vmul.f32 %v428, 0.6931472
        %v430 = vlog2.pop %v381
        %v431 = vmul.f32 %v430, 0.6931472
        %v432 = vlog2.pop %v382
        %v433 = vmul.f32 %v432, 0.6931472
        %v434 = vlog2.pop %v383
        %v435 = vmul.f32 %v434, 0.6931472
        %v436 = vlog2.pop %v384
        %v437 = vmul.f32 %v436, 0.6931472
        %v438 = vlog2.pop %v385
        %v439 = vmul.f32 %v438, 0.6931472
        %v440 = vlog2.pop %v386
        %v441 = vmul.f32 %v440, 0.6931472
        %v442 = vlog2.pop %v387
        %v443 = vmul.f32 %v442, 0.6931472
        %v444 = vlog2.pop %v388
        %v445 = vmul.f32 %v444, 0.6931472
        %v446 = vlog2.pop %v389
        %v447 = vmul.f32 %v446, 0.6931472
        %v448 = vlog2.pop %v390
        %v449 = vmul.f32 %v448, 0.6931472
        %v450 = vlog2.pop %v391
        %v451 = vmul.f32 %v450, 0.6931472
        %v452 = vlog2.pop %v392
        %v453 = vmul.f32 %v452, 0.6931472
        %v454 = vlog2.pop %v393
        %v455 = vmul.f32 %v454, 0.6931472
        %v456 = vlog2.pop %v394
        %v457 = vmul.f32 %v456, 0.6931472
        %v458 = vlog2.pop %v395
        %v459 = vmul.f32 %v458, 0.6931472
        %v460 = vmax.f32 %v397, -100.0
        %v461 = vmax.f32 %v399, -100.0
        %v462 = vmax.f32 %v401, -100.0
        %v463 = vmax.f32 %v403, -100.0
        %v464 = vmax.f32 %v405, -100.0
        %v465 = vmax.f32 %v407, -100.0
        %v466 = vmax.f32 %v409, -100.0
        %v467 = vmax.f32 %v411, -100.0
        %v468 = vmax.f32 %v413, -100.0
        %v469 = vmax.f32 %v415, -100.0
        %v470 = vmax.f32 %v417, -100.0
        %v471 = vmax.f32 %v419, -100.0
        %v472 = vmax.f32 %v421, -100.0
        %v473 = vmax.f32 %v423, -100.0
        %v474 = vmax.f32 %v425, -100.0
        %v475 = vmax.f32 %v427, -100.0
        %v476 = vmax.f32 %v429, -100.0
        %v477 = vmax.f32 %v431, -100.0
        %v478 = vmax.f32 %v433, -100.0
        %v479 = vmax.f32 %v435, -100.0
        %v480 = vmax.f32 %v437, -100.0
        %v481 = vmax.f32 %v439, -100.0
        %v482 = vmax.f32 %v441, -100.0
        %v483 = vmax.f32 %v443, -100.0
        %v484 = vmax.f32 %v445, -100.0
        %v485 = vmax.f32 %v447, -100.0
        %v486 = vmax.f32 %v449, -100.0
        %v487 = vmax.f32 %v451, -100.0
        %v488 = vmax.f32 %v453, -100.0
        %v489 = vmax.f32 %v455, -100.0
        %v490 = vmax.f32 %v457, -100.0
        %v491 = vmax.f32 %v459, -100.0
        %v492 = vmul.f32 %v236, %v332
        %v493 = vmul.f32 %v237, %v333
        %v494 = vmul.f32 %v238, %v334
        %v495 = vmul.f32 %v239, %v335
        %v496 = vmul.f32 %v240, %v336
        %v497 = vmul.f32 %v241, %v337
        %v498 = vmul.f32 %v242, %v338
        %v499 = vmul.f32 %v243, %v339
        %v500 = vmul.f32 %v244, %v340
        %v501 = vmul.f32 %v245, %v341
        %v502 = vmul.f32 %v246, %v342
        %v503 = vmul.f32 %v247, %v343
        %v504 = vmul.f32 %v248, %v344
        %v505 = vmul.f32 %v249, %v345
        %v506 = vmul.f32 %v250, %v346
        %v507 = vmul.f32 %v251, %v347
        %v508 = vmul.f32 %v252, %v348
        %v509 = vmul.f32 %v253, %v349
        %v510 = vmul.f32 %v254, %v350
        %v511 = vmul.f32 %v255, %v351
        %v512 = vmul.f32 %v256, %v352
        %v513 = vmul.f32 %v257, %v353
        %v514 = vmul.f32 %v258, %v354
        %v515 = vmul.f32 %v259, %v355
        %v516 = vmul.f32 %v260, %v356
        %v517 = vmul.f32 %v261, %v357
        %v518 = vmul.f32 %v262, %v358
        %v519 = vmul.f32 %v263, %v359
        %v520 = vmul.f32 %v264, %v360
        %v521 = vmul.f32 %v265, %v361
        %v522 = vmul.f32 %v266, %v362
        %v523 = vmul.f32 %v267, %v363
        %v524 = vsub.f32 1.0, %v236
        %v525 = vsub.f32 1.0, %v237
        %v526 = vsub.f32 1.0, %v238
        %v527 = vsub.f32 1.0, %v239
        %v528 = vsub.f32 1.0, %v240
        %v529 = vsub.f32 1.0, %v241
        %v530 = vsub.f32 1.0, %v242
        %v531 = vsub.f32 1.0, %v243
        %v532 = vsub.f32 1.0, %v244
        %v533 = vsub.f32 1.0, %v245
        %v534 = vsub.f32 1.0, %v246
        %v535 = vsub.f32 1.0, %v247
        %v536 = vsub.f32 1.0, %v248
        %v537 = vsub.f32 1.0, %v249
        %v538 = vsub.f32 1.0, %v250
        %v539 = vsub.f32 1.0, %v251
        %v540 = vsub.f32 1.0, %v252
        %v541 = vsub.f32 1.0, %v253
        %v542 = vsub.f32 1.0, %v254
        %v543 = vsub.f32 1.0, %v255
        %v544 = vsub.f32 1.0, %v256
        %v545 = vsub.f32 1.0, %v257
        %v546 = vsub.f32 1.0, %v258
        %v547 = vsub.f32 1.0, %v259
        %v548 = vsub.f32 1.0, %v260
        %v549 = vsub.f32 1.0, %v261
        %v550 = vsub.f32 1.0, %v262
        %v551 = vsub.f32 1.0, %v263
        %v552 = vsub.f32 1.0, %v264
        %v553 = vsub.f32 1.0, %v265
        %v554 = vsub.f32 1.0, %v266
        %v555 = vsub.f32 1.0, %v267
        %v556 = vmul.f32 %v524, %v460
        %v557 = vmul.f32 %v525, %v461
        %v558 = vmul.f32 %v526, %v462
        %v559 = vmul.f32 %v527, %v463
        %v560 = vmul.f32 %v528, %v464
        %v561 = vmul.f32 %v529, %v465
        %v562 = vmul.f32 %v530, %v466
        %v563 = vmul.f32 %v531, %v467
        %v564 = vmul.f32 %v532, %v468
        %v565 = vmul.f32 %v533, %v469
        %v566 = vmul.f32 %v534, %v470
        %v567 = vmul.f32 %v535, %v471
        %v568 = vmul.f32 %v536, %v472
        %v569 = vmul.f32 %v537, %v473
        %v570 = vmul.f32 %v538, %v474
        %v571 = vmul.f32 %v539, %v475
        %v572 = vmul.f32 %v540, %v476
        %v573 = vmul.f32 %v541, %v477
        %v574 = vmul.f32 %v542, %v478
        %v575 = vmul.f32 %v543, %v479
        %v576 = vmul.f32 %v544, %v480
        %v577 = vmul.f32 %v545, %v481
        %v578 = vmul.f32 %v546, %v482
        %v579 = vmul.f32 %v547, %v483
        %v580 = vmul.f32 %v548, %v484
        %v581 = vmul.f32 %v549, %v485
        %v582 = vmul.f32 %v550, %v486
        %v583 = vmul.f32 %v551, %v487
        %v584 = vmul.f32 %v552, %v488
        %v585 = vmul.f32 %v553, %v489
        %v586 = vmul.f32 %v554, %v490
        %v587 = vmul.f32 %v555, %v491
        %v588 = vadd.f32 %v492, %v556
        %v589 = vadd.f32 %v493, %v557
        %v590 = vadd.f32 %v494, %v558
        %v591 = vadd.f32 %v495, %v559
        %v592 = vadd.f32 %v496, %v560
        %v593 = vadd.f32 %v497, %v561
        %v594 = vadd.f32 %v498, %v562
        %v595 = vadd.f32 %v499, %v563
        %v596 = vadd.f32 %v500, %v564
        %v597 = vadd.f32 %v501, %v565
        %v598 = vadd.f32 %v502, %v566
        %v599 = vadd.f32 %v503, %v567
        %v600 = vadd.f32 %v504, %v568
        %v601 = vadd.f32 %v505, %v569
        %v602 = vadd.f32 %v506, %v570
        %v603 = vadd.f32 %v507, %v571
        %v604 = vadd.f32 %v508, %v572
        %v605 = vadd.f32 %v509, %v573
        %v606 = vadd.f32 %v510, %v574
        %v607 = vadd.f32 %v511, %v575
        %v608 = vadd.f32 %v512, %v576
        %v609 = vadd.f32 %v513, %v577
        %v610 = vadd.f32 %v514, %v578
        %v611 = vadd.f32 %v515, %v579
        %v612 = vadd.f32 %v516, %v580
        %v613 = vadd.f32 %v517, %v581
        %v614 = vadd.f32 %v518, %v582
        %v615 = vadd.f32 %v519, %v583
        %v616 = vadd.f32 %v520, %v584
        %v617 = vadd.f32 %v521, %v585
        %v618 = vadd.f32 %v522, %v586
        %v619 = vadd.f32 %v523, %v587
        %v620 = vsub.f32 0.0, %v588
        %v621 = vsub.f32 0.0, %v589
        %v622 = vsub.f32 0.0, %v590
        %v623 = vsub.f32 0.0, %v591
        %v624 = vsub.f32 0.0, %v592
        %v625 = vsub.f32 0.0, %v593
        %v626 = vsub.f32 0.0, %v594
        %v627 = vsub.f32 0.0, %v595
        %v628 = vsub.f32 0.0, %v596
        %v629 = vsub.f32 0.0, %v597
        %v630 = vsub.f32 0.0, %v598
        %v631 = vsub.f32 0.0, %v599
        %v632 = vsub.f32 0.0, %v600
        %v633 = vsub.f32 0.0, %v601
        %v634 = vsub.f32 0.0, %v602
        %v635 = vsub.f32 0.0, %v603
        %v636 = vsub.f32 0.0, %v604
        %v637 = vsub.f32 0.0, %v605
        %v638 = vsub.f32 0.0, %v606
        %v639 = vsub.f32 0.0, %v607
        %v640 = vsub.f32 0.0, %v608
        %v641 = vsub.f32 0.0, %v609
        %v642 = vsub.f32 0.0, %v610
        %v643 = vsub.f32 0.0, %v611
        %v644 = vsub.f32 0.0, %v612
        %v645 = vsub.f32 0.0, %v613
        %v646 = vsub.f32 0.0, %v614
        %v647 = vsub.f32 0.0, %v615
        %v648 = vsub.f32 0.0, %v616
        %v649 = vsub.f32 0.0, %v617
        %v650 = vsub.f32 0.0, %v618
        %v651 = vsub.f32 0.0, %v619
        %v652 = vsub.f32 0.0, %v620
        %v653 = vsub.f32 0.0, %v621
        %v654 = vsub.f32 0.0, %v622
        %v655 = vsub.f32 0.0, %v623
        %v656 = vsub.f32 0.0, %v624
        %v657 = vsub.f32 0.0, %v625
        %v658 = vsub.f32 0.0, %v626
        %v659 = vsub.f32 0.0, %v627
        %v660 = vsub.f32 0.0, %v628
        %v661 = vsub.f32 0.0, %v629
        %v662 = vsub.f32 0.0, %v630
        %v663 = vsub.f32 0.0, %v631
        %v664 = vsub.f32 0.0, %v632
        %v665 = vsub.f32 0.0, %v633
        %v666 = vsub.f32 0.0, %v634
        %v667 = vsub.f32 0.0, %v635
        %v668 = vsub.f32 0.0, %v636
        %v669 = vsub.f32 0.0, %v637
        %v670 = vsub.f32 0.0, %v638
        %v671 = vsub.f32 0.0, %v639
        %v672 = vsub.f32 0.0, %v640
        %v673 = vsub.f32 0.0, %v641
        %v674 = vsub.f32 0.0, %v642
        %v675 = vsub.f32 0.0, %v643
        %v676 = vsub.f32 0.0, %v644
        %v677 = vsub.f32 0.0, %v645
        %v678 = vsub.f32 0.0, %v646
        %v679 = vsub.f32 0.0, %v647
        %v680 = vsub.f32 0.0, %v648
        %v681 = vsub.f32 0.0, %v649
        %v682 = vsub.f32 0.0, %v650
        %v683 = vsub.f32 0.0, %v651
        %v684 = vmul.f32 %v652, 1.442695
        %v685 = vpow.pop %v684
        %v686 = vmul.f32 %v653, 1.442695
        %v687 = vpow.pop %v686
        %v688 = vmul.f32 %v654, 1.442695
        %v689 = vpow.pop %v688
        %v690 = vmul.f32 %v655, 1.442695
        %v691 = vpow.pop %v690
        %v692 = vmul.f32 %v656, 1.442695
        %v693 = vpow.pop %v692
        %v694 = vmul.f32 %v657, 1.442695
        %v695 = vpow.pop %v694
        %v696 = vmul.f32 %v658, 1.442695
        %v697 = vpow.pop %v696
        %v698 = vmul.f32 %v659, 1.442695
        %v699 = vpow.pop %v698
        %v700 = vmul.f32 %v660, 1.442695
        %v701 = vpow.pop %v700
        %v702 = vmul.f32 %v661, 1.442695
        %v703 = vpow.pop %v702
        %v704 = vmul.f32 %v662, 1.442695
        %v705 = vpow.pop %v704
        %v706 = vmul.f32 %v663, 1.442695
        %v707 = vpow.pop %v706
        %v708 = vmul.f32 %v664, 1.442695
        %v709 = vpow.pop %v708
        %v710 = vmul.f32 %v665, 1.442695
        %v711 = vpow.pop %v710
        %v712 = vmul.f32 %v666, 1.442695
        %v713 = vpow.pop %v712
        %v714 = vmul.f32 %v667, 1.442695
        %v715 = vpow.pop %v714
        %v716 = vmul.f32 %v668, 1.442695
        %v717 = vpow.pop %v716
        %v718 = vmul.f32 %v669, 1.442695
        %v719 = vpow.pop %v718
        %v720 = vmul.f32 %v670, 1.442695
        %v721 = vpow.pop %v720
        %v722 = vmul.f32 %v671, 1.442695
        %v723 = vpow.pop %v722
        %v724 = vmul.f32 %v672, 1.442695
        %v725 = vpow.pop %v724
        %v726 = vmul.f32 %v673, 1.442695
        %v727 = vpow.pop %v726
        %v728 = vmul.f32 %v674, 1.442695
        %v729 = vpow.pop %v728
        %v730 = vmul.f32 %v675, 1.442695
        %v731 = vpow.pop %v730
        %v732 = vmul.f32 %v676, 1.442695
        %v733 = vpow.pop %v732
        %v734 = vmul.f32 %v677, 1.442695
        %v735 = vpow.pop %v734
        %v736 = vmul.f32 %v678, 1.442695
        %v737 = vpow.pop %v736
        %v738 = vmul.f32 %v679, 1.442695
        %v739 = vpow.pop %v738
        %v740 = vmul.f32 %v680, 1.442695
        %v741 = vpow.pop %v740
        %v742 = vmul.f32 %v681, 1.442695
        %v743 = vpow.pop %v742
        %v744 = vmul.f32 %v682, 1.442695
        %v745 = vpow.pop %v744
        %v746 = vmul.f32 %v683, 1.442695
        %v747 = vpow.pop %v746
        %v748 = vsub.f32 1.0, %v685
        %v749 = vsub.f32 1.0, %v687
        %v750 = vsub.f32 1.0, %v689
        %v751 = vsub.f32 1.0, %v691
        %v752 = vsub.f32 1.0, %v693
        %v753 = vsub.f32 1.0, %v695
        %v754 = vsub.f32 1.0, %v697
        %v755 = vsub.f32 1.0, %v699
        %v756 = vsub.f32 1.0, %v701
        %v757 = vsub.f32 1.0, %v703
        %v758 = vsub.f32 1.0, %v705
        %v759 = vsub.f32 1.0, %v707
        %v760 = vsub.f32 1.0, %v709
        %v761 = vsub.f32 1.0, %v711
        %v762 = vsub.f32 1.0, %v713
        %v763 = vsub.f32 1.0, %v715
        %v764 = vsub.f32 1.0, %v717
        %v765 = vsub.f32 1.0, %v719
        %v766 = vsub.f32 1.0, %v721
        %v767 = vsub.f32 1.0, %v723
        %v768 = vsub.f32 1.0, %v725
        %v769 = vsub.f32 1.0, %v727
        %v770 = vsub.f32 1.0, %v729
        %v771 = vsub.f32 1.0, %v731
        %v772 = vsub.f32 1.0, %v733
        %v773 = vsub.f32 1.0, %v735
        %v774 = vsub.f32 1.0, %v737
        %v775 = vsub.f32 1.0, %v739
        %v776 = vsub.f32 1.0, %v741
        %v777 = vsub.f32 1.0, %v743
        %v778 = vsub.f32 1.0, %v745
        %v779 = vsub.f32 1.0, %v747
        %v780 = vmul.f32 %v748, %v748
        %v781 = vmul.f32 %v749, %v749
        %v782 = vmul.f32 %v750, %v750
        %v783 = vmul.f32 %v751, %v751
        %v784 = vmul.f32 %v752, %v752
        %v785 = vmul.f32 %v753, %v753
        %v786 = vmul.f32 %v754, %v754
        %v787 = vmul.f32 %v755, %v755
        %v788 = vmul.f32 %v756, %v756
        %v789 = vmul.f32 %v757, %v757
        %v790 = vmul.f32 %v758, %v758
        %v791 = vmul.f32 %v759, %v759
        %v792 = vmul.f32 %v760, %v760
        %v793 = vmul.f32 %v761, %v761
        %v794 = vmul.f32 %v762, %v762
        %v795 = vmul.f32 %v763, %v763
        %v796 = vmul.f32 %v764, %v764
        %v797 = vmul.f32 %v765, %v765
        %v798 = vmul.f32 %v766, %v766
        %v799 = vmul.f32 %v767, %v767
        %v800 = vmul.f32 %v768, %v768
        %v801 = vmul.f32 %v769, %v769
        %v802 = vmul.f32 %v770, %v770
        %v803 = vmul.f32 %v771, %v771
        %v804 = vmul.f32 %v772, %v772
        %v805 = vmul.f32 %v773, %v773
        %v806 = vmul.f32 %v774, %v774
        %v807 = vmul.f32 %v775, %v775
        %v808 = vmul.f32 %v776, %v776
        %v809 = vmul.f32 %v777, %v777
        %v810 = vmul.f32 %v778, %v778
        %v811 = vmul.f32 %v779, %v779
        %v812 = vmul.f32 %v780, %v620
        %v813 = vmul.f32 %v781, %v621
        %v814 = vmul.f32 %v782, %v622
        %v815 = vmul.f32 %v783, %v623
        %v816 = vmul.f32 %v784, %v624
        %v817 = vmul.f32 %v785, %v625
        %v818 = vmul.f32 %v786, %v626
        %v819 = vmul.f32 %v787, %v627
        %v820 = vmul.f32 %v788, %v628
        %v821 = vmul.f32 %v789, %v629
        %v822 = vmul.f32 %v790, %v630
        %v823 = vmul.f32 %v791, %v631
        %v824 = vmul.f32 %v792, %v632
        %v825 = vmul.f32 %v793, %v633
        %v826 = vmul.f32 %v794, %v634
        %v827 = vmul.f32 %v795, %v635
        %v828 = vmul.f32 %v796, %v636
        %v829 = vmul.f32 %v797, %v637
        %v830 = vmul.f32 %v798, %v638
        %v831 = vmul.f32 %v799, %v639
        %v832 = vmul.f32 %v800, %v640
        %v833 = vmul.f32 %v801, %v641
        %v834 = vmul.f32 %v802, %v642
        %v835 = vmul.f32 %v803, %v643
        %v836 = vmul.f32 %v804, %v644
        %v837 = vmul.f32 %v805, %v645
        %v838 = vmul.f32 %v806, %v646
        %v839 = vmul.f32 %v807, %v647
        %v840 = vmul.f32 %v808, %v648
        %v841 = vmul.f32 %v809, %v649
        %v842 = vmul.f32 %v810, %v650
        %v843 = vmul.f32 %v811, %v651
        %v844 = vadd.f32 %v812, %v813
        %v845 = vadd.f32 %v844, %v814
        %v846 = vadd.f32 %v845, %v815
        %v847 = vadd.f32 %v846, %v816
        %v848 = vadd.f32 %v847, %v817
        %v849 = vadd.f32 %v848, %v818
        %v850 = vadd.f32 %v849, %v819
        %v851 = vadd.f32 %v850, %v820
        %v852 = vadd.f32 %v851, %v821
        %v853 = vadd.f32 %v852, %v822
        %v854 = vadd.f32 %v853, %v823
        %v855 = vadd.f32 %v854, %v824
        %v856 = vadd.f32 %v855, %v825
        %v857 = vadd.f32 %v856, %v826
        %v858 = vadd.f32 %v857, %v827
        %v859 = vadd.f32 %v858, %v828
        %v860 = vadd.f32 %v859, %v829
        %v861 = vadd.f32 %v860, %v830
        %v862 = vadd.f32 %v861, %v831
        %v863 = vadd.f32 %v862, %v832
        %v864 = vadd.f32 %v863, %v833
        %v865 = vadd.f32 %v864, %v834
        %v866 = vadd.f32 %v865, %v835
        %v867 = vadd.f32 %v866, %v836
        %v868 = vadd.f32 %v867, %v837
        %v869 = vadd.f32 %v868, %v838
        %v870 = vadd.f32 %v869, %v839
        %v871 = vadd.f32 %v870, %v840
        %v872 = vadd.f32 %v871, %v841
        %v873 = vadd.f32 %v872, %v842
        %v874 = vadd.f32 %v873, %v843
        %v875 = vadd.f32 %v874, 0.0
        %876 = vst [vmem:[%s201] sm:$0xff] %v875
        %s877 = sand.u32 %s82, 1
        %s878 = scalar_lea.sflag [#allocation4], %s877
        %s879 = sand.u32 %s82, 1
        %s880 = smul.addr %s879, 8
        %s881 = scalar_lea.vmem [#allocation7], %s880
        // Predicated region
        $region37: #{tpu_custom_call.1} parent=27 // pred_check
          %p882 = pneg %p92
        $region38: #{tpu_custom_call.1} parent=27 // pred_check_branch
          %884 = sbr.rel (%p882) target = $region40
        $region39: #{tpu_custom_call.1} parent=27 // pred_region
          %s886 = ssub.s32 128, 128
          %887 = vsyncadd %s878, %s886
          %s888 = smul.addr %s22, 128
          %s889 = scalar_lea.hbm %s2, %s888
          %s891 = sshll.u32 %s881, 4
          %s892 = int_to_ptr.vmem [resolvable:$true] %s891
          %894 = dma.vmem_to_hbm [thread:$0]  %s892, 128, %s889, %s878
        $region40: #{tpu_custom_call.1} parent=27 // pred_fallthru
          _
      $region28: #{tpu_custom_call.1} parent=5 // pred_fallthru
        _
      %p895 = scmp.le.s32.totalorder 2, %s17
      // Predicated region
      $region41: #{tpu_custom_call.1} parent=5 // pred_check
        %p896 = pneg %p895
      $region42: #{tpu_custom_call.1} parent=5 // pred_check_branch
        %898 = sbr.rel (%p896) target = $region44
      $region43: #{tpu_custom_call.1} parent=5 // pred_region
        %s899 = ssub.s32 %s17, 2
        // Predicated region
        $region45: #{tpu_custom_call.1} parent=43 // pred_check
          %p900 = pneg %p98
        $region46: #{tpu_custom_call.1} parent=43 // pred_check_branch
          %902 = sbr.rel (%p900) target = $region48
        $region47: #{tpu_custom_call.1} parent=43 // pred_region
          %s903 = sand.u32 %s83, 1
          %s904 = scalar_lea.sflag [#allocation4], %s903
          %s905 = sand.u32 %s83, 1
          %s906 = smul.addr %s905, 8
          %s907 = scalar_lea.vmem [#allocation7], %s906
          %908 = dma.done %s904, 128
        $region48: #{tpu_custom_call.1} parent=43 // pred_fallthru
          _
      $region44: #{tpu_custom_call.1} parent=5 // pred_fallthru
        _
    $region6: #{tpu_custom_call.1} parent=1 // loop_footer
      %s21 = sadd.s32 1, %s17
    $region7: #{tpu_custom_call.1} parent=1 // loop_footer_branch
      %16 = sbr.rel target = $region3
    $region8: #{tpu_custom_call.1} parent=1 // loop_exit
      _
    %909 = vsyncpa [#allocation3], 1
    %s910 = scalar_lea.sflag [#allocation3], 1
    %911 = vsyncpa %s910, 1
    %912 = vsyncpa [#allocation6], 1
    %s913 = scalar_lea.sflag [#allocation6], 1
    %914 = vsyncpa %s913, 1
    %915 = vsyncpa [#allocation4], 1
    %s916 = scalar_lea.sflag [#allocation4], 1
    %917 = vsyncpa %s916, 1

</llo_original>
